<compile_context>
chip_gen: v6e
topology: v6e:2x2x1
jax: 0.10.0
libtpu: 0.0.40
codegen_flags: <defaults>
</compile_context>

<pallas_src>
import functools
import math

import jax
import jax.numpy as jnp
from jax.experimental import pallas as pl
from jax.experimental.pallas import tpu as pltpu

LANE = 128           # vreg lane width (last dim)
SUBLANE = 8          # f32 vreg sublane height
MAX_ROW_TILE = 2048  # rows/block: 2048 x 128 x f32 = 1 MiB; 2 in x 2 buf = 4 MiB
ACC_ROWS = 32        # accumulator height per split (shorter VPU add chains)


def _round_up(x, m):
    return (x + m - 1) // m * m


def _cdiv(a, b):
    return (a + b - 1) // b


def _static_pow(x, gamma):
    """x ** gamma for x >= 0.  Integer / half-integer gamma in (0, 16] lowers
    to repeated multiplies (+ at most one sqrt) instead of jnp.power's
    exp(gamma*log(x)) pair, sparing the single EUP slot."""
    g = float(gamma)
    if g == 0.0:
        return jnp.ones_like(x)
    if 0.0 < g <= 16.0 and (2.0 * g) == int(2.0 * g):
        n = int(g)
        out = None
        for _ in range(n):
            out = x if out is None else out * x
        if g != n:                       # trailing 0.5 power
            s = jnp.sqrt(x)
            out = s if out is None else out * s
        return out
    return jnp.power(x, jnp.float32(g))


def _focal_bce_terms(x, z, alpha, gamma):
    """Per-element bce + focal term (f32), numerically-stable torch form."""
    x = x.astype(jnp.float32)   # logits
    z = z.astype(jnp.float32)   # targets (expected in [0, 1])
    bce = jnp.maximum(x, 0.0) - x * z + jnp.log1p(jnp.exp(-jnp.abs(x)))
    pt = jnp.exp(-bce)
    mod = _static_pow(1.0 - pt, gamma)
    return bce + jnp.float32(alpha) * mod * bce


def _num_tensorcores():
    """2 TensorCores per device only on v7x; v5e/v6e have one."""
    try:
        kind = jax.devices()[0].device_kind.lower()
    except Exception:  # pragma: no cover - defensive
        return 1
    return 2 if "v7" in kind else 1


def _combined_loss_kernel(pred_ref, tgt_ref, acc_ref, *, alpha, gamma, rows,
                          row_tile, acc_rows, steps, full_blocks, needs_mask):
    c = pl.program_id(0)   # split (one per TensorCore on v7x)
    i = pl.program_id(1)   # reduction step within split ("arbitrary")

    # Per-split (acc_rows, 128) vector accumulator lives in the output block,
    # which stays resident in VMEM across the inner grid axis.
    @pl.when(i == 0)
    def _init():
        acc_ref[...] = jnp.zeros_like(acc_ref)

    term = _focal_bce_terms(pred_ref[...], tgt_ref[...], alpha, gamma)

    def _fold(v):
        # Sublane-aligned fold to the accumulator height: pure VPU adds,
        # acc_rows//8 independent vreg chains (no cross-lane XLU work).
        return v.reshape(row_tile // acc_rows, acc_rows, LANE).sum(axis=0)

    if needs_mask:
        # Static geometry: only the boundary block and clamped duplicate
        # blocks can contain invalid rows.  Interior blocks skip the mask.
        blk = c * steps + i  # *unclamped* global block index

        @pl.when(blk < full_blocks)
        def _hot():
            acc_ref[...] += _fold(term)

        @pl.when(blk >= full_blocks)
        def _edge():
            row_ids = blk * row_tile + jax.lax.broadcasted_iota(
                jnp.int32, term.shape, 0)
            acc_ref[...] += _fold(jnp.where(row_ids < rows, term, 0.0))
    else:
        acc_ref[...] += _fold(term)


def combined_loss(pred, target, alpha=0.25, gamma=2.0, *,
                  nsplit=None, max_row_tile=MAX_ROW_TILE):
    assert pred.shape == target.shape
    total = int(pred.size)
    assert total > 0

    auto_split = nsplit is None
    if auto_split:
        nsplit = _num_tensorcores()
    nsplit = max(1, int(nsplit))

    p_flat = pred.reshape(-1)
    t_flat = target.reshape(-1)

    # The kernel consumes the 8*128-aligned prefix (zero-copy reshape to a
    # lane-dense [rows, 128] slab, rows a multiple of 8); the <1024-element
    # ragged tail is reduced in plain XLA -- no jnp.pad full copy.
    aligned = total - total % (SUBLANE * LANE)
    tail_sum = jnp.float32(0.0)
    if aligned != total:
        tail_sum = jnp.sum(_focal_bce_terms(
            p_flat[aligned:], t_flat[aligned:], alpha, gamma))
    if aligned == 0:
        return tail_sum / jnp.float32(total)

    if aligned != total:
        p_head, t_head = p_flat[:aligned], t_flat[:aligned]
    else:
        p_head, t_head = p_flat, t_flat

    rows = aligned // LANE
    p2 = p_head.reshape(rows, LANE)
    t2 = t_head.reshape(rows, LANE)

    # Tile sizing.  Narrow dtypes pack more rows per sublane, so round the
    # tile up to the packing factor (16 for bf16, 32 for int8/bool).
    itemsize = min(p2.dtype.itemsize, t2.dtype.itemsize)
    min_rows = max(SUBLANE, 32 // max(1, itemsize))
    tile_req = _round_up(_cdiv(rows, nsplit), min_rows)
    row_tile = min(_round_up(max_row_tile, min_rows), tile_req)
    if row_tile >= rows:
        row_tile = rows            # single block along rows (always legal)
    acc_rows = math.gcd(row_tile, ACC_ROWS)   # >= 8, divides row_tile

    n_blocks = _cdiv(rows, row_tile)
    steps = _cdiv(n_blocks, nsplit)
    full_blocks = rows // row_tile            # blocks with no invalid rows
    needs_mask = (full_blocks != n_blocks) or (nsplit * steps != n_blocks)

    def in_map(c, i):
        # Clamp so the DMA window always starts in-bounds; the in-kernel
        # boundary mask discards anything a clamped (duplicate) block reads.
        return (jnp.minimum(c * steps + i, n_blocks - 1), 0)

    kernel = functools.partial(
        _combined_loss_kernel, alpha=float(alpha), gamma=float(gamma),
        rows=rows, row_tile=row_tile, acc_rows=acc_rows, steps=steps,
        full_blocks=full_blocks, needs_mask=needs_mask)

    # Real core-level sharding of the leading axis only where it exists
    # (v7x); otherwise it is an ordinary sequential axis.
    if auto_split and nsplit > 1 and hasattr(pltpu, "CORE_PARALLEL"):
        dims = (pltpu.CORE_PARALLEL, pltpu.ARBITRARY)
    else:
        dims = ("arbitrary", "arbitrary")

    partials = pl.pallas_call(
        kernel,
        out_shape=jax.ShapeDtypeStruct((nsplit * acc_rows, LANE), jnp.float32),
        grid_spec=pltpu.PrefetchScalarGridSpec(
            num_scalar_prefetch=0,
            grid=(nsplit, steps),
            in_specs=[
                pl.BlockSpec((row_tile, LANE), in_map),
                pl.BlockSpec((row_tile, LANE), in_map),
            ],
            out_specs=pl.BlockSpec((acc_rows, LANE), lambda c, i: (c, 0)),
        ),
        compiler_params=pltpu.CompilerParams(dimension_semantics=dims),
    )(p2, t2)

    # Tiny final cross-lane reduction + mean normalization in XLA.
    return (jnp.sum(partials) + tail_sum) / jnp.float32(total)


def _reference_loss(pred, target, alpha=0.25, gamma=2.0):
    x = pred.astype(jnp.float32)
    z = target.astype(jnp.float32)
    bce = jnp.maximum(x, 0.0) - x * z + jnp.log1p(jnp.exp(-jnp.abs(x)))
    pt = jnp.exp(-bce)
    focal = alpha * (1.0 - pt) ** gamma * bce
    return jnp.mean(bce + focal)


if __name__ == "__main__":
    key = jax.random.PRNGKey(0)
    k_pred, k_tgt = jax.random.split(key)

    # 1) Typical small NCHW logits / binary targets (fully aligned path).
    B, C, H, W = 2, 4, 16, 16
    pred = jax.random.normal(k_pred, (B, C, H, W), dtype=jnp.float32) * 2.0
    target = jax.random.bernoulli(k_tgt, 0.5, (B, C, H, W)).astype(jnp.float32)
    loss = jax.block_until_ready(combined_loss(pred, target, 0.25, 2.0))
    ref = _reference_loss(pred, target, 0.25, 2.0)
    assert jnp.allclose(loss, ref, rtol=1e-5, atol=1e-6), (loss, ref)

    # 2) Ragged element count (not a multiple of 8*128) -> XLA tail path.
    pred2 = jax.random.normal(k_pred, (2, 3, 15, 17), dtype=jnp.float32)
    target2 = jax.random.bernoulli(k_tgt, 0.5, (2, 3, 15, 17)).astype(jnp.float32)
    loss2 = jax.block_until_ready(combined_loss(pred2, target2))
    ref2 = _reference_loss(pred2, target2)
    assert jnp.allclose(loss2, ref2, rtol=1e-5, atol=1e-6), (loss2, ref2)

    # 3) Multi-step grid with boundary-block mask + clamped duplicate block
    #    (small forced tile so those code paths are exercised).
    pred3 = jax.random.normal(k_pred, (2, 4, 16, 40), dtype=jnp.float32)
    target3 = jax.random.bernoulli(k_tgt, 0.5, (2, 4, 16, 40)).astype(jnp.float32)
    loss3 = jax.block_until_ready(
        combined_loss(pred3, target3, nsplit=2, max_row_tile=16))
    ref3 = _reference_loss(pred3, target3)
    assert jnp.allclose(loss3, ref3, rtol=1e-5, atol=1e-6), (loss3, ref3)

    # 4) bf16 logits streamed as-is + non-default (half-integer) gamma.
    pred_bf16 = pred.astype(jnp.bfloat16)
    loss4 = jax.block_until_ready(combined_loss(pred_bf16, target, gamma=1.5))
    ref4 = _reference_loss(pred_bf16.astype(jnp.float32), target, gamma=1.5)
    assert jnp.allclose(loss4, ref4, rtol=1e-4, atol=1e-4), (loss4, ref4)

    print("KERNEL_OK")
</pallas_src>

<mosaic_0001>
module attributes {stable_mosaic.version = 11 : i64} {
  func.func @_combined_loss_kernel(%arg0: i32, %arg1: i32, %arg2: memref<16x128xf32, #tpu.memory_space<vmem>>, %arg3: memref<16x128xf32, #tpu.memory_space<vmem>>, %arg4: memref<16x128xf32, #tpu.memory_space<vmem>>) attributes {dimension_semantics = [#tpu.dimension_semantics<arbitrary>, #tpu.dimension_semantics<arbitrary>], iteration_bounds = array<i64: 1, 1>, scalar_prefetch = 0 : i64, scratch_operands = 0 : i64, tpu.core_type = #tpu.core_type<tc>, window_params = [{transform_indices = @transform_0, window_bounds = array<i64: 16, 128>}, {transform_indices = @transform_1, window_bounds = array<i64: 16, 128>}, {transform_indices = @transform_2, window_bounds = array<i64: 16, 128>}]} {
    %c0_i32 = arith.constant 0 : i32
    %0 = arith.cmpi eq, %arg1, %c0_i32 : i32
    %1 = arith.extui %0 : i1 to i32
    %c0_i32_0 = arith.constant 0 : i32
    %2 = arith.cmpi ne, %1, %c0_i32_0 : i32
    scf.if %2 {
      %cst_13 = arith.constant 0.000000e+00 : f32
      %30 = vector.broadcast %cst_13 : f32 to vector<16x128xf32>
      %c0_14 = arith.constant 0 : index
      %c0_15 = arith.constant 0 : index
      %31 = vector.load %arg4[%c0_14, %c0_15] : memref<16x128xf32, #tpu.memory_space<vmem>>, vector<16x128xf32>
      tpu.vector_store %arg4[%c0_14, %c0_15], %30 {strides = array<i32>} : memref<16x128xf32, #tpu.memory_space<vmem>>, vector<16x128xf32>,
    } else {
    }
    %c0 = arith.constant 0 : index
    %c0_1 = arith.constant 0 : index
    %3 = vector.load %arg2[%c0, %c0_1] : memref<16x128xf32, #tpu.memory_space<vmem>>, vector<16x128xf32>
    %c0_2 = arith.constant 0 : index
    %c0_3 = arith.constant 0 : index
    %4 = vector.load %arg3[%c0_2, %c0_3] : memref<16x128xf32, #tpu.memory_space<vmem>>, vector<16x128xf32>
    %cst = arith.constant 0.000000e+00 : f32
    %5 = vector.broadcast %cst : f32 to vector<16x128xf32>
    %6 = arith.maximumf %3, %5 : vector<16x128xf32>
    %7 = arith.mulf %3, %4 : vector<16x128xf32>
    %8 = arith.subf %6, %7 : vector<16x128xf32>
    %9 = math.absf %3 : vector<16x128xf32>
    %cst_4 = arith.constant 0.000000e+00 : f32
    %10 = vector.broadcast %cst_4 : f32 to vector<16x128xf32>
    %11 = arith.subf %10, %9 : vector<16x128xf32>
    %12 = math.exp %11 : vector<16x128xf32>
    %13 = math.log1p %12 : vector<16x128xf32>
    %14 = arith.addf %8, %13 : vector<16x128xf32>
    %cst_5 = arith.constant 0.000000e+00 : f32
    %15 = vector.broadcast %cst_5 : f32 to vector<16x128xf32>
    %16 = arith.subf %15, %14 : vector<16x128xf32>
    %17 = math.exp %16 : vector<16x128xf32>
    %cst_6 = arith.constant 1.000000e+00 : f32
    %18 = vector.broadcast %cst_6 : f32 to vector<16x128xf32>
    %19 = arith.subf %18, %17 : vector<16x128xf32>
    %20 = arith.mulf %19, %19 : vector<16x128xf32>
    %cst_7 = arith.constant 2.500000e-01 : f32
    %21 = vector.broadcast %cst_7 : f32 to vector<16x128xf32>
    %22 = arith.mulf %21, %20 : vector<16x128xf32>
    %23 = arith.mulf %22, %14 : vector<16x128xf32>
    %24 = arith.addf %14, %23 : vector<16x128xf32>
    %c0_8 = arith.constant 0 : index
    %c0_9 = arith.constant 0 : index
    %25 = vector.load %arg4[%c0_8, %c0_9] : memref<16x128xf32, #tpu.memory_space<vmem>>, vector<16x128xf32>
    %26 = vector.shape_cast %24 : vector<16x128xf32> to vector<1x16x128xf32>
    %cst_10 = arith.constant dense<0.000000e+00> : vector<16x128xf32>
    %27 = vector.multi_reduction <add>, %26, %cst_10 [0] : vector<1x16x128xf32> to vector<16x128xf32>
    %28 = arith.addf %25, %27 : vector<16x128xf32>
    %c0_11 = arith.constant 0 : index
    %c0_12 = arith.constant 0 : index
    %29 = vector.load %arg4[%c0_11, %c0_12] : memref<16x128xf32, #tpu.memory_space<vmem>>, vector<16x128xf32>
    tpu.vector_store %arg4[%c0_11, %c0_12], %28 {strides = array<i32>} : memref<16x128xf32, #tpu.memory_space<vmem>>, vector<16x128xf32>,
    return
  }
  func.func @transform_0(%arg0: i32, %arg1: i32) -> (i32, i32) {
    %c1_i32 = arith.constant 1 : i32
    %0 = arith.muli %arg0, %c1_i32 : i32
    %1 = arith.addi %0, %arg1 : i32
    %c0_i32 = arith.constant 0 : i32
    %2 = arith.minsi %1, %c0_i32 : i32
    %c0_i32_0 = arith.constant 0 : i32
    %c0_i32_1 = arith.constant 0 : i32
    return %2, %c0_i32_0 : i32, i32
  }
  func.func @transform_1(%arg0: i32, %arg1: i32) -> (i32, i32) {
    %c1_i32 = arith.constant 1 : i32
    %0 = arith.muli %arg0, %c1_i32 : i32
    %1 = arith.addi %0, %arg1 : i32
    %c0_i32 = arith.constant 0 : i32
    %2 = arith.minsi %1, %c0_i32 : i32
    %c0_i32_0 = arith.constant 0 : i32
    %c0_i32_1 = arith.constant 0 : i32
    return %2, %c0_i32_0 : i32, i32
  }
  func.func @transform_2(%arg0: i32, %arg1: i32) -> (i32, i32) {
    %c0_i32 = arith.constant 0 : i32
    %c0_i32_0 = arith.constant 0 : i32
    return %arg0, %c0_i32 : i32, i32
  }
}

</mosaic_0001>

<llo_original>
// kernel: tpu_custom_call.1
$region0: #{tpu_custom_call.1}
  #allocation0 [shape = 'u32[]', space=smem, size = 0x4, offset = 0x4, fixed_abs, tag = 'smem constant byte address 0x4 - core index']
  #allocation1 [shape = 'u32[144,128]{1,0:T(1,128)}', space=vmem, size = 0x12000, scoped, tag = 'internal scratch']
  %s0 = inlined_call_operand.hbm [shape: f32[16,128], index: 0, kind: input, shape index: {}]
  %s1 = inlined_call_operand.hbm [shape: f32[16,128], index: 1, kind: input, shape index: {}]
  %s2 = inlined_call_operand.hbm [shape: f32[16,128], index: 2, kind: output, shape index: {}]
  %s3 = sld [smem:[#allocation0]]
  $region30: #{tpu_custom_call.1} parent=0
    _
  %s5 = ssub.s32 1, %s3
  %s6 = scalar_select 0, %s5, %s3
  $region1: #{tpu_custom_call.1} parent=0
    #allocation2 [shape = 'u8[8192]{0}', space=vmem, size = 0x2000, scoped, tag = 'input window, operand 0, single buffered']
    #allocation3 [shape = 's32[1]{0}', space=sflag, size = 0x4, scoped, tag = 'scoped memory for tpu_custom_call.1']
    #allocation4 [shape = 's32[1]{0}', space=sflag, size = 0x4, scoped, tag = 'scoped memory for tpu_custom_call.1']
    #allocation5 [shape = 'u8[8192]{0}', space=vmem, size = 0x2000, scoped, tag = 'input window, operand 1, single buffered']
    #allocation6 [shape = 's32[1]{0}', space=sflag, size = 0x4, scoped, tag = 'scoped memory for tpu_custom_call.1']
    #allocation7 [shape = 'u8[8192]{0}', space=vmem, size = 0x2000, scoped, tag = 'output window, operand 0, single buffered']
    %7 = vsyncpa [#allocation3], 0
    %8 = vsyncpa [#allocation6], 0
    %9 = vsyncpa [#allocation4], 0
    // Predicated region
    $region2: #{tpu_custom_call.1} parent=1 // pred_check
      _
    $region3: #{tpu_custom_call.1} parent=1 // pred_check_branch
      %11 = sbr.rel (0) target = $region5
    $region4: #{tpu_custom_call.1} parent=1 // pred_region
      %s12 = sadd.s32 0, 0
      %p13 = scmp.lt.s32.totalorder %s12, 0
      %s14 = scalar_select %p13, %s12, 0
      %s15 = smul.u32 2, %s14
      %s17 = ssub.s32 256, 256
      %18 = vsyncadd [#allocation3], %s17
      %s19 = smul.addr %s15, 128
      %s20 = scalar_lea.hbm %s0, %s19
      %s21 = sshll.u32 [#allocation2], 4
      %s22 = int_to_ptr.vmem [resolvable:$true] %s21
      %27 = dma.hbm_to_vmem [thread:$0]  %s20, 256, %s22, [#allocation3], 128, 128, 8
    $region5: #{tpu_custom_call.1} parent=1 // pred_fallthru
      _
    // Predicated region
    $region6: #{tpu_custom_call.1} parent=1 // pred_check
      _
    $region7: #{tpu_custom_call.1} parent=1 // pred_check_branch
      %29 = sbr.rel (0) target = $region9
    $region8: #{tpu_custom_call.1} parent=1 // pred_region
      %s30 = sadd.s32 0, 0
      %p31 = scmp.lt.s32.totalorder %s30, 0
      %s32 = scalar_select %p31, %s30, 0
      %s33 = smul.u32 2, %s32
      %s35 = ssub.s32 256, 256
      %36 = vsyncadd [#allocation6], %s35
      %s37 = smul.addr %s33, 128
      %s38 = scalar_lea.hbm %s1, %s37
      %s39 = sshll.u32 [#allocation5], 4
      %s40 = int_to_ptr.vmem [resolvable:$true] %s39
      %45 = dma.hbm_to_vmem [thread:$0]  %s38, 256, %s40, [#allocation6], 128, 128, 8
    $region9: #{tpu_custom_call.1} parent=1 // pred_fallthru
      _
    // Predicated region
    $region10: #{tpu_custom_call.1} parent=1 // pred_check
      _
    $region11: #{tpu_custom_call.1} parent=1 // pred_check_branch
      %47 = sbr.rel (0) target = $region13
    $region12: #{tpu_custom_call.1} parent=1 // pred_region
      %48 = dma.done [#allocation3], 256
    $region13: #{tpu_custom_call.1} parent=1 // pred_fallthru
      _
    // Predicated region
    $region14: #{tpu_custom_call.1} parent=1 // pred_check
      _
    $region15: #{tpu_custom_call.1} parent=1 // pred_check_branch
      %50 = sbr.rel (0) target = $region17
    $region16: #{tpu_custom_call.1} parent=1 // pred_region
      %51 = dma.done [#allocation6], 256
    $region17: #{tpu_custom_call.1} parent=1 // pred_fallthru
      _
    %s52 = sadd.s32 0, 0
    %p53 = scmp.lt.s32.totalorder %s52, 0
    %s54 = scalar_select %p53, %s52, 0
    %s55 = smul.u32 2, %s54
    %s56 = sadd.s32 0, 0
    %p57 = scmp.lt.s32.totalorder %s56, 0
    %s58 = scalar_select %p57, %s56, 0
    %s59 = smul.u32 2, %s58
    %p60 = scmp.eq.s32.totalorder 0, 0
    // Predicated region
    $region18: #{tpu_custom_call.1} parent=1 // pred_check
      %p61 = pneg %p60
    $region19: #{tpu_custom_call.1} parent=1 // pred_check_branch
      %63 = sbr.rel (%p61) target = $region21
    $region20: #{tpu_custom_call.1} parent=1 // pred_region
      %64 = vst [vmem:[#allocation7] sm:$0xff] 0.0
      %65 = vst [vmem:[#allocation7 + $0x8] sm:$0xff] 0.0
    $region21: #{tpu_custom_call.1} parent=1 // pred_fallthru
      _
    %v66 = vld [vmem:[#allocation2] sm:$0xff]
    %v67 = vld [vmem:[#allocation2 + $0x8] sm:$0xff]
    %v68 = vld [vmem:[#allocation5] sm:$0xff]
    %v69 = vld [vmem:[#allocation5 + $0x8] sm:$0xff]
    %v70 = vmax.f32 %v66, 0.0
    %v71 = vmax.f32 %v67, 0.0
    %v72 = vmul.f32 %v66, %v68
    %v73 = vmul.f32 %v67, %v69
    %v74 = vsub.f32 %v70, %v72
    %v75 = vsub.f32 %v71, %v73
    %v76 = vand.u32 2147483647, %v66
    %v77 = vand.u32 2147483647, %v67
    %v78 = vsub.f32 0.0, %v76
    %v79 = vsub.f32 0.0, %v77
    %v80 = vmul.f32 %v78, 1.442695
    %v81 = vpow.pop %v80
    %v82 = vmul.f32 %v79, 1.442695
    %v83 = vpow.pop %v82
    %v84 = vadd.f32 %v81, 1.0
    %v85 = vlog2.pop %v84
    %v86 = vmul.f32 %v85, 0.6931472
    %v87 = vmul.f32 -0.5, %v81
    %v88 = vadd.f32 %v87, 1.0
    %v89 = vmul.f32 %v88, %v81
    %v90 = vand.u32 2147483647, %v81
    %vm91 = vcmp.lt.f32.partialorder %v90, 0.0004427343
    %v92 = vsel %vm91, %v89, %v86
    %v93 = vadd.f32 %v83, 1.0
    %v94 = vlog2.pop %v93
    %v95 = vmul.f32 %v94, 0.6931472
    %v96 = vmul.f32 -0.5, %v83
    %v97 = vadd.f32 %v96, 1.0
    %v98 = vmul.f32 %v97, %v83
    %v99 = vand.u32 2147483647, %v83
    %vm100 = vcmp.lt.f32.partialorder %v99, 0.0004427343
    %v101 = vsel %vm100, %v98, %v95
    %v102 = vadd.f32 %v74, %v92
    %v103 = vadd.f32 %v75, %v101
    %v104 = vsub.f32 0.0, %v102
    %v105 = vsub.f32 0.0, %v103
    %v106 = vmul.f32 %v104, 1.442695
    %v107 = vpow.pop %v106
    %v108 = vmul.f32 %v105, 1.442695
    %v109 = vpow.pop %v108
    %v110 = vsub.f32 1.0, %v107
    %v111 = vsub.f32 1.0, %v109
    %v112 = vmul.f32 %v110, %v110
    %v113 = vmul.f32 %v111, %v111
    %v114 = vmul.f32 %v112, 0.25
    %v115 = vmul.f32 %v113, 0.25
    %v116 = vmul.f32 %v114, %v102
    %v117 = vmul.f32 %v115, %v103
    %v118 = vadd.f32 %v102, %v116
    %v119 = vadd.f32 %v103, %v117
    %v120 = vld [vmem:[#allocation7] sm:$0xff]
    %v121 = vld [vmem:[#allocation7 + $0x8] sm:$0xff]
    %v122 = vadd.f32 %v118, 0.0
    %v123 = vadd.f32 %v119, 0.0
    %v124 = vadd.f32 %v120, %v122
    %v125 = vadd.f32 %v121, %v123
    %126 = vst [vmem:[#allocation7] sm:$0xff] %v124
    %127 = vst [vmem:[#allocation7 + $0x8] sm:$0xff] %v125
    // Predicated region
    $region22: #{tpu_custom_call.1} parent=1 // pred_check
      _
    $region23: #{tpu_custom_call.1} parent=1 // pred_check_branch
      %129 = sbr.rel (0) target = $region25
    $region24: #{tpu_custom_call.1} parent=1 // pred_region
      %s131 = ssub.s32 256, 256
      %132 = vsyncadd [#allocation4], %s131
      %s133 = sshll.u32 [#allocation7], 4
      %s134 = int_to_ptr.vmem [resolvable:$true] %s133
      %139 = dma.vmem_to_hbm [thread:$0]  %s134, 256, %s2, [#allocation4], 128, 128, 8
    $region25: #{tpu_custom_call.1} parent=1 // pred_fallthru
      _
    // Predicated region
    $region26: #{tpu_custom_call.1} parent=1 // pred_check
      _
    $region27: #{tpu_custom_call.1} parent=1 // pred_check_branch
      %141 = sbr.rel (0) target = $region29
    $region28: #{tpu_custom_call.1} parent=1 // pred_region
      %142 = dma.done [#allocation4], 256
    $region29: #{tpu_custom_call.1} parent=1 // pred_fallthru
      _
    %143 = vsyncpa [#allocation3], 1
    %144 = vsyncpa [#allocation6], 1
    %145 = vsyncpa [#allocation4], 1

</llo_original>
